<compile_context>
chip_gen: v7x
topology: tpu7x:2x2x1
jax: 0.10.0
libtpu: 0.0.40
codegen_flags: <defaults>
</compile_context>

<pallas_src>
import math

import jax
import jax.numpy as jnp
from jax.experimental import pallas as pl
from jax.experimental.pallas import tpu as pltpu

_MIB = 1 << 20


# --------------------------------------------------------------------------
# Shape resolution (PyTorch-style: single -1 allowed, sizes must match).
# --------------------------------------------------------------------------
def _resolve_shape(shape, total):
    if isinstance(shape, int):
        shape = (shape,)
    shape = tuple(int(s) for s in shape)
    neg = [i for i, s in enumerate(shape) if s == -1]
    if len(neg) > 1:
        raise ValueError(f"only one dimension can be -1, got {shape}")
    if neg:
        known = 1
        for s in shape:
            if s != -1:
                known *= s
        if known == 0 or total % known != 0:
            raise ValueError(
                f"cannot reshape array of size {total} into shape {shape}")
        shape = tuple(total // known if s == -1 else s for s in shape)
    prod = 1
    for s in shape:
        prod *= s
    if prod != total:
        raise ValueError(
            f"cannot reshape array of size {total} into shape {shape}")
    return shape


# --------------------------------------------------------------------------
# Static chunk planning helpers.
# --------------------------------------------------------------------------
def _split_rows(start, nrows, parts):
    """Split [start, start+nrows) into `parts` nearly-equal static ranges."""
    parts = max(1, min(parts, nrows))
    base, rem = divmod(nrows, parts)
    out, off = [], start
    for i in range(parts):
        sz = base + (1 if i < rem else 0)
        out.append((off, sz))
        off += sz
    return out


def _num_tensorcores():
    """Best-effort TensorCore-per-chip detection (2 on v7x, else 1)."""
    try:
        info = pltpu.get_tpu_info()
    except Exception:
        return 1
    for attr in ("num_cores", "num_tensorcores", "tensorcores_per_chip",
                 "cores_per_chip", "num_cores_per_chip"):
        v = getattr(info, attr, None)
        if isinstance(v, int) and v > 0:
            return v
    return 1


# --------------------------------------------------------------------------
# Kernel factory: chunked concurrent HBM->HBM DMA copy (optionally 2-core).
# --------------------------------------------------------------------------
def _make_copy_kernel(chunks_per_prog, slice_rows):
    """chunks_per_prog: one list of static (start_row, n_rows) per grid program.
    slice_rows=False -> single full-ref copy (no leading-dim slicing)."""
    n_progs = len(chunks_per_prog)

    def _issue_and_wait(x_hbm, o_hbm, sem, chunks):
        copies = []
        for i, (start, size) in enumerate(chunks):
            if slice_rows:
                cp = pltpu.make_async_copy(
                    x_hbm.at[pl.ds(start, size)],
                    o_hbm.at[pl.ds(start, size)],
                    sem.at[i])
            else:
                cp = pltpu.make_async_copy(x_hbm, o_hbm, sem.at[i])
            cp.start()                      # all chunks in flight concurrently
            copies.append(cp)
        for cp in copies:
            cp.wait()

    def kernel(x_hbm, o_hbm, sem):
        if n_progs == 1:
            _issue_and_wait(x_hbm, o_hbm, sem, chunks_per_prog[0])
        else:
            pid = pl.program_id(0)
            for p in range(n_progs):
                @pl.when(pid == p)
                def _(chunks=chunks_per_prog[p]):
                    _issue_and_wait(x_hbm, o_hbm, sem, chunks)

    return kernel


# --------------------------------------------------------------------------
# Public wrapper: equivalent of torch.Tensor.reshape(shape).
# --------------------------------------------------------------------------
def pallas_reshape(x, shape, *, materialize=True, min_kernel_bytes=1 * _MIB):
    x = jnp.asarray(x)
    total = int(x.size)
    shape = _resolve_shape(shape, total)

    itemsize = jnp.dtype(x.dtype).itemsize
    nbytes = total * itemsize

    # Metadata-only / degenerate / tiny paths.  The true cost of reshaping a
    # contiguous array is zero bytes; below the threshold the fixed custom-call
    # + DMA-descriptor overhead dwarfs the copy, so let XLA handle it.
    # (May alias the input — same contract as torch.Tensor.reshape.)
    if (not materialize) or total == 0 or nbytes < min_kernel_bytes:
        return x.reshape(shape)

    # ---- static chunk / core planning (all Python ints) ----
    lead = x.shape[0] if x.ndim >= 1 else 1

    # Concurrent DMA descriptors (per program).
    if nbytes < 4 * _MIB:
        k = 1
    else:
        k = max(2, min(8, math.ceil(nbytes / (16 * _MIB))))

    # Split across TensorCores only when it pays off (v7x, large copy).
    n_progs = 2 if (_num_tensorcores() >= 2
                    and nbytes >= 16 * _MIB and lead >= 2) else 1

    slice_rows = (x.ndim >= 1) and (k > 1 or n_progs > 1)
    if not slice_rows:
        # Single full-ref DMA (the small / unsliceable case).
        k, n_progs = 1, 1
        chunks_per_prog = [[(0, lead)]]
    else:
        prog_ranges = _split_rows(0, lead, n_progs)
        n_progs = len(prog_ranges)
        chunks_per_prog = [_split_rows(s, n, k) for (s, n) in prog_ranges]

    max_chunks = max(len(c) for c in chunks_per_prog)
    kernel = _make_copy_kernel(chunks_per_prog, slice_rows)

    call_kwargs = dict(
        out_shape=jax.ShapeDtypeStruct(x.shape, x.dtype),
        in_specs=[pl.BlockSpec(memory_space=pl.ANY)],   # raw HBM ref, no auto-DMA
        out_specs=pl.BlockSpec(memory_space=pl.ANY),    # raw HBM ref, no auto-DMA
        scratch_shapes=[pltpu.SemaphoreType.DMA((max_chunks,))],
        cost_estimate=pl.CostEstimate(
            flops=0, transcendentals=0, bytes_accessed=2 * nbytes),
    )
    if n_progs > 1:
        call_kwargs["grid"] = (n_progs,)
        call_kwargs["compiler_params"] = pltpu.CompilerParams(
            dimension_semantics=("parallel",))

    out = pl.pallas_call(kernel, **call_kwargs)(x)

    # Apply the target shape exactly once, on the freshly copied buffer.
    return out.reshape(shape)


if __name__ == "__main__":
    key = jax.random.PRNGKey(0)
    k1, k2, k3 = jax.random.split(key, 3)

    # 1) Small conv-style NCHW tensor; force the kernel path.
    x = jax.random.normal(k1, (2, 4, 16, 16), dtype=jnp.float32)
    y = jax.block_until_ready(pallas_reshape(x, (2, -1), min_kernel_bytes=0))
    ref = x.reshape((2, 4 * 16 * 16))
    assert y.shape == ref.shape and y.dtype == ref.dtype, (y.shape, ref.shape)
    assert bool(jnp.all(y == ref)), "mismatch vs reference reshape (case 1)"

    # 2) Odd sizes (not multiples of 8/128); kernel path forced.
    x2 = jax.random.normal(k2, (3, 5, 7), dtype=jnp.float32)
    y2 = jax.block_until_ready(pallas_reshape(x2, (5, -1), min_kernel_bytes=0))
    ref2 = x2.reshape((5, 21))
    assert y2.shape == ref2.shape, (y2.shape, ref2.shape)
    assert bool(jnp.all(y2 == ref2)), "mismatch vs reference reshape (case 2)"

    # 3) 24 MiB input: takes the kernel path with the default threshold and
    #    exercises chunked concurrent DMAs (k >= 2) along the leading dim.
    x3 = jax.random.normal(k3, (48, 256, 512), dtype=jnp.float32)
    y3 = jax.block_until_ready(pallas_reshape(x3, (48 * 256, 512)))
    ref3 = x3.reshape((48 * 256, 512))
    assert y3.shape == ref3.shape, (y3.shape, ref3.shape)
    assert bool(jnp.all(y3 == ref3)), "mismatch vs reference reshape (case 3)"

    # 4) Tiny-tensor bypass (default threshold): plain XLA reshape, no kernel.
    y4 = jax.block_until_ready(pallas_reshape(x, (4, 4, -1)))
    ref4 = x.reshape((4, 4, 128))
    assert y4.shape == ref4.shape and bool(jnp.all(y4 == ref4)), "case 4"

    print("KERNEL_OK")
</pallas_src>

<mosaic_0001>
module attributes {stable_mosaic.version = 11 : i64} {
  func.func @kernel(%arg0: memref<2x4x16x16xf32, #tpu.memory_space<any>>, %arg1: memref<2x4x16x16xf32, #tpu.memory_space<any>>, %arg2: memref<1x!tpu.dma_semaphore, #tpu.memory_space<semaphore_mem>>) attributes {dimension_semantics = [], scalar_prefetch = 0 : i64, scratch_operands = 1 : i64, tpu.core_type = #tpu.core_type<tc>} {
    %c0_i32 = arith.constant 0 : i32
    %0 = tpu.memref_slice %arg2[%c0_i32] : memref<1x!tpu.dma_semaphore, #tpu.memory_space<semaphore_mem>> -> memref<1x!tpu.dma_semaphore, #tpu.memory_space<semaphore_mem>>
    %1 = tpu.memref_squeeze %0 : memref<1x!tpu.dma_semaphore, #tpu.memory_space<semaphore_mem>> -> memref<!tpu.dma_semaphore, #tpu.memory_space<semaphore_mem>>
    tpu.enqueue_dma source(%arg0 : memref<2x4x16x16xf32, #tpu.memory_space<any>>) target(%arg1 : memref<2x4x16x16xf32, #tpu.memory_space<any>>) target_semaphore(%1 : memref<!tpu.dma_semaphore, #tpu.memory_space<semaphore_mem>>)
    %c0_i32_0 = arith.constant 0 : i32
    %2 = tpu.memref_slice %arg2[%c0_i32_0] : memref<1x!tpu.dma_semaphore, #tpu.memory_space<semaphore_mem>> -> memref<1x!tpu.dma_semaphore, #tpu.memory_space<semaphore_mem>>
    %3 = tpu.memref_squeeze %2 : memref<1x!tpu.dma_semaphore, #tpu.memory_space<semaphore_mem>> -> memref<!tpu.dma_semaphore, #tpu.memory_space<semaphore_mem>>
    tpu.wait_dma2 semaphore(%3 : memref<!tpu.dma_semaphore, #tpu.memory_space<semaphore_mem>>) src(%arg0 : memref<2x4x16x16xf32, #tpu.memory_space<any>>) dst(%arg1 : memref<2x4x16x16xf32, #tpu.memory_space<any>>)
    return
  }
}

</mosaic_0001>

<llo_original>
// kernel: tpu_custom_call.1
$region0: #{tpu_custom_call.1}
  #allocation0 [shape = 'u32[]', space=smem, size = 0x4, offset = 0x4, fixed_abs, tag = 'smem constant byte address 0x4 - core index']
  #allocation1 [shape = 'u32[144,128]{1,0:T(1,128)}', space=vmem, size = 0x12000, scoped, tag = 'internal scratch']
  #allocation2 [shape = 's32[1]{0}', space=sflag, size = 0x4, scoped, tag = 'scratch operand']
  #allocation3 [shape = 's32[]', space=sflag, size = 0x4, offset = 0, fixed_abs, tag = 'sflag constant byte address 0x0 - dummy sync flag']
  #allocation4 [shape = 'u32[0]{0}', space=smem, size = 0, offset = 0, fixed_abs, tag = 'smem constant byte address 0x0 - null']
  %s0 = inlined_call_operand.hbm [shape: f32[2,4,16,16], index: 0, kind: input, shape index: {}]
  %s1 = inlined_call_operand.hbm [shape: f32[2,4,16,16], index: 1, kind: output, shape index: {}]
  %s2 = sld [smem:[#allocation0]]
  $region2: #{tpu_custom_call.1} parent=0
    _
  %s4 = ssub.s32 1, %s2
  %s5 = scalar_select 0, %s4, %s2
  %s7 = sshll.u32 1, 14
  %s8 = sxor.u32 4294967295, %s7
  %s11 = sshll.u32 3, 24
  %s12 = sxor.u32 4294967295, %s11
  %s13 = sand.u32 0, %s12
  %s15 = sor.u32 %s13, 0
  %18 = dma.general %s0, 2048, %s1, [#allocation2], [#allocation3], [#allocation4], %s15, 0
  %s19 = smul.u32 2, 4
  %s20 = smul.u32 %s19, 16
  %s21 = smul.u32 %s20, 1
  %s22 = sshll.u32 %s21, 4
  %23 = dma.done [#allocation2], %s22
  %24 = vsyncmov [#allocation2]
  %s25 = vpop.sfrf %24
  %p26 = scmp.eq.s32.totalorder %s25, 0
  %p27 = pneg %p26
  %29 = shalt.err (%p27)

</llo_original>
